<compile_context>
chip_gen: v7x
topology: tpu7x:2x2x1
jax: 0.10.0
libtpu: 0.0.40
codegen_flags: <defaults>
</compile_context>

<pallas_src>
import numpy as np
import jax
import jax.numpy as jnp
from jax import lax
from jax.experimental import pallas as pl
from jax.experimental.pallas import tpu as pltpu


# ----------------------------------------------------------------------------
# Kernel 1: masked broadcast multiply, token-major layout
#   x_tm : (HW, C)  activations (lane axis = channels)
#   m_tm : (HW, 1)  mask logits (original dtype; thresholded in-kernel)
#   emb  : (HW, C)  x * (mask > 0)
# ----------------------------------------------------------------------------
def _maskpool_kernel(x_ref, m_ref, emb_ref):
    # Threshold in the mask's own dtype, then cast the 0/1 result to x dtype.
    m_bin = (m_ref[...] > 0).astype(x_ref.dtype)          # (tile_hw, 1)
    emb_ref[...] = x_ref[...] * m_bin                     # lane-broadcast multiply


def _pick_hw_tile(HW, C, x_itemsize, m_itemsize, vmem_budget_bytes=8 << 20):
    """Largest row tile whose double-buffered in+out tiles fit the VMEM budget."""
    # dtype-aware sublane granularity (bf16 packs 16 rows/vreg, int8/fp8 32).
    min_item = min(x_itemsize, m_itemsize)
    sub = 8 if min_item >= 4 else (16 if min_item == 2 else 32)
    per_row = 2 * (2 * C * x_itemsize + m_itemsize)       # 2x (x in + emb out) + mask
    max_rows = max(vmem_budget_bytes // per_row, sub)
    if HW <= max_rows:
        return HW
    t = (max_rows // sub) * sub
    while t >= sub:
        if HW % t == 0:
            return t
        t -= sub
    return HW                                             # fallback: single block


def mask_pool_pallas(x_tm, m_tm):
    HW, C = x_tm.shape
    assert m_tm.shape == (HW, 1)
    tile_hw = _pick_hw_tile(HW, C, x_tm.dtype.itemsize, m_tm.dtype.itemsize)
    grid = (HW // tile_hw,)
    return pl.pallas_call(
        _maskpool_kernel,
        out_shape=jax.ShapeDtypeStruct((HW, C), x_tm.dtype),
        grid=grid,
        in_specs=[
            pl.BlockSpec((tile_hw, C), lambda i: (i, 0)),
            pl.BlockSpec((tile_hw, 1), lambda i: (i, 0)),
        ],
        out_specs=pl.BlockSpec((tile_hw, C), lambda i: (i, 0)),
        compiler_params=pltpu.CompilerParams(
            dimension_semantics=("parallel",)),  # independent HW tiles -> 2 TCs on v7x
    )(x_tm, m_tm)


# ----------------------------------------------------------------------------
# Kernel 2: fused k-means (all iterations in one pallas_call)
#   grid=(num_iterations,), centroids (k, d) kept resident in VMEM as f32.
#   Tokens are padded to a static bucket; the true count n_valid arrives via
#   scalar prefetch (SMEM) and padded rows are masked out of the one-hot.
# ----------------------------------------------------------------------------
def _kmeans_kernel(nvalid_ref, init_ref, tok_ref, cen_ref):
    it = pl.program_id(0)
    n, d = tok_ref.shape
    k = cen_ref.shape[0]

    @pl.when(it == 0)
    def _():
        cen_ref[...] = init_ref[...]

    cents = cen_ref[...]                                   # (k, d) f32 (resident)
    tokens_bf = tok_ref[...]                               # (n, d) bf16
    cents_bf = cents.astype(jnp.bfloat16)

    # argmin_j ||t - c_j||^2 == argmin_j (||c_j||^2 - 2 t.c_j); per-row ||t||^2 dropped.
    cross = lax.dot_general(tokens_bf, cents_bf, (((1,), (1,)), ((), ())),
                            preferred_element_type=jnp.float32)          # (n, k) bf16 MXU
    c_sq = lax.dot_general(jnp.ones((1, d), jnp.float32), cents * cents,
                           (((1,), (1,)), ((), ())),
                           preferred_element_type=jnp.float32)           # (1, k) f32
    score = c_sq - 2.0 * cross                                           # (n, k) f32

    # First-index argmin as one-hot (matches torch.argmin tie-breaking);
    # padded rows (row >= n_valid) are masked out of the assignment.
    col = lax.broadcasted_iota(jnp.int32, score.shape, 1)
    row = lax.broadcasted_iota(jnp.int32, score.shape, 0)
    min_s = jnp.min(score, axis=1, keepdims=True)
    first_min = jnp.min(jnp.where(score <= min_s, col, k),
                        axis=1, keepdims=True)                           # (n, 1)
    valid = row < nvalid_ref[0]
    one_hot = jnp.where((col == first_min) & valid, 1.0, 0.0).astype(jnp.float32)

    # Per-cluster sums (bf16 MXU inputs, exact f32 accumulation) and counts.
    sums = lax.dot_general(one_hot.astype(jnp.bfloat16), tokens_bf,
                           (((0,), (0,)), ((), ())),
                           preferred_element_type=jnp.float32)           # (k, d)
    counts = lax.dot_general(one_hot, jnp.ones((n, 1), jnp.float32),
                             (((0,), (0,)), ((), ())),
                             preferred_element_type=jnp.float32)         # (k, 1)
    mean = sums / jnp.maximum(counts, 1.0)
    new_cents = jnp.where(counts > 0, mean, cents)         # empty cluster -> keep old

    # torch.allclose(old, new, rtol=1e-5, atol=1e-6); the reference breaks BEFORE
    # assigning, so on convergence the OLD centroids are kept and every later
    # iteration is an idempotent no-op.
    # TODO(synk): data-dependent early exit (SMEM done-flag + pl.when around the
    # matmuls) would skip the post-convergence iterations' MXU work entirely.
    ok = (jnp.abs(cents - new_cents)
          <= (1e-6 + 1e-5 * jnp.abs(new_cents))).astype(jnp.float32)
    ok_all = jnp.min(jnp.min(ok, axis=1, keepdims=True),
                     axis=0, keepdims=True)                              # (1, 1)
    cen_ref[...] = jnp.where(ok_all > 0.5, cents, new_cents)


def _bucket(n, step=512):
    """Pad the data-dependent token count to a static bucket (bounds recompiles)."""
    return max(step, ((n + step - 1) // step) * step)


def kmeans_fast_pallas(tokens_padded, n_valid, num_clusters=10, num_iterations=20, *, key):
    n_pad, d = tokens_padded.shape
    tokens_f32 = tokens_padded.astype(jnp.float32)
    # torch.randperm(n)[:k] centroid init -> deterministic jax.random permutation.
    perm = jax.random.permutation(key, n_valid)[:num_clusters]
    init = jnp.take(tokens_f32, perm, axis=0)              # (k, d) f32
    tokens_bf = tokens_f32.astype(jnp.bfloat16)            # halves resident token VMEM
    nval = jnp.full((1,), n_valid, dtype=jnp.int32)

    # TODO(synk): tile the n axis (inner grid / emit_pipeline with sums/counts
    # accumulators) when n_pad*d*2B approaches the VMEM budget (v7x: 64 MiB).
    grid_spec = pltpu.PrefetchScalarGridSpec(
        num_scalar_prefetch=1,
        grid=(num_iterations,),
        in_specs=[
            pl.BlockSpec((num_clusters, d), lambda it, nv: (0, 0)),
            pl.BlockSpec((n_pad, d), lambda it, nv: (0, 0)),
        ],
        out_specs=pl.BlockSpec((num_clusters, d), lambda it, nv: (0, 0)),
    )
    return pl.pallas_call(
        _kmeans_kernel,
        out_shape=jax.ShapeDtypeStruct((num_clusters, d), jnp.float32),
        grid_spec=grid_spec,
        compiler_params=pltpu.CompilerParams(
            dimension_semantics=("arbitrary",)),           # centroid carry across iters
    )(nval, init, tokens_bf)


# ----------------------------------------------------------------------------
# MaskPooling.forward
# ----------------------------------------------------------------------------
def mask_pooling_forward(x, mask, *, kmeans_key):
    B, C = x.shape[:2]
    assert B == 1 and mask.shape[0] == 1 and mask.shape[1] == 1, \
        "MaskPooling expects x=(1,C,H,W), mask=(1,1,H,W)"

    # F.interpolate(x, size=mask.shape[-2:], mode='bilinear', align_corners=False)
    if x.shape[-2:] != mask.shape[-2:]:
        x = jax.image.resize(x, (B, C) + tuple(mask.shape[-2:]),
                             method="bilinear", antialias=False)

    H, W = x.shape[-2:]
    HW = H * W
    # Token-major layout: one up-front transpose; emb rows are then tokens.
    x_tm = jnp.transpose(x.reshape(C, HW))                 # (HW, C)
    m_tm = mask.reshape(HW, 1)                             # (HW, 1), original dtype
    # denorm = mask.sum((-1,-2), keepdim=True) + 1e-8 is dead code in the reference; skipped.

    # Spatial selection flags == torch.any(x*(mask>0) != 0, dim=(0,1)) for finite x.
    # Computed as one tiny plain-JAX op (not inside the kernel) so the host fetch
    # only waits on it and np.nonzero overlaps the Pallas multiply below.
    flags = jnp.logical_and(m_tm[:, 0] > 0, jnp.any(x_tm != 0, axis=1))  # (HW,) bool
    if hasattr(flags, "copy_to_host_async"):
        flags.copy_to_host_async()

    emb_tm = mask_pool_pallas(x_tm, m_tm)                  # (HW, C), dispatched async

    # TODO(synk): mask_emb[:, :, mask] is a data-dependent dynamic-K select; only the
    # tiny (HW,) bool flag map crosses to host, and the row indices are computed on
    # the host while the Pallas kernel runs on device.
    sel = np.asarray(jax.device_get(flags))
    idx = np.nonzero(sel)[0].astype(np.int32)
    n_tokens = int(idx.shape[0])

    if n_tokens > 10:
        n_pad = _bucket(n_tokens)
        idx_pad = np.zeros((n_pad,), np.int32)
        idx_pad[:n_tokens] = idx                            # pad rows masked out in-kernel
        tokens = jnp.take(emb_tm, jnp.asarray(idx_pad), axis=0)   # (n_pad, C) row gather
        return kmeans_fast_pallas(tokens, n_tokens, key=kmeans_key)
    tokens = jnp.take(emb_tm, jnp.asarray(idx), axis=0)     # (n_tokens, C)
    return tokens


if __name__ == "__main__":
    key = jax.random.PRNGKey(0)
    kx, km, kk = jax.random.split(key, 3)

    B, C, H, W = 1, 8, 16, 16
    x = jax.random.normal(kx, (B, C, H, W), dtype=jnp.float32)
    # mask "logits": positive entries define the region (>> 10 pixels -> kmeans path runs)
    mask = jax.random.normal(km, (1, 1, H, W), dtype=jnp.float32)

    out = mask_pooling_forward(x, mask, kmeans_key=kk)
    out = jax.block_until_ready(out)

    assert out.ndim == 2 and out.shape[-1] == C
    assert out.shape[0] == 10  # kmeans reduced the region tokens to 10 centroids
    print("KERNEL_OK")
</pallas_src>

<mosaic_0001>
module attributes {stable_mosaic.version = 11 : i64} {
  func.func @_maskpool_kernel(%arg0: i32, %arg1: memref<256x8xf32, #tpu.memory_space<vmem>>, %arg2: memref<256x1xf32, #tpu.memory_space<vmem>>, %arg3: memref<256x8xf32, #tpu.memory_space<vmem>>) attributes {dimension_semantics = [#tpu.dimension_semantics<parallel>], iteration_bounds = array<i64: 1>, scalar_prefetch = 0 : i64, scratch_operands = 0 : i64, tpu.core_type = #tpu.core_type<tc>, window_params = [{transform_indices = @transform_0, window_bounds = array<i64: 256, 8>}, {transform_indices = @transform_1, window_bounds = array<i64: 256, 1>}, {transform_indices = @transform_2, window_bounds = array<i64: 256, 8>}]} {
    %c0 = arith.constant 0 : index
    %c0_0 = arith.constant 0 : index
    %0 = vector.load %arg2[%c0, %c0_0] : memref<256x1xf32, #tpu.memory_space<vmem>>, vector<256x1xf32>
    %cst = arith.constant 0.000000e+00 : f32
    %1 = vector.broadcast %cst : f32 to vector<256x1xf32>
    %2 = arith.cmpf ogt, %0, %1 : vector<256x1xf32>
    %3 = arith.extui %2 : vector<256x1xi1> to vector<256x1xi32>
    %4 = arith.sitofp %3 : vector<256x1xi32> to vector<256x1xf32>
    %c0_1 = arith.constant 0 : index
    %c0_2 = arith.constant 0 : index
    %5 = vector.load %arg1[%c0_1, %c0_2] : memref<256x8xf32, #tpu.memory_space<vmem>>, vector<256x8xf32>
    %6 = vector.broadcast %4 : vector<256x1xf32> to vector<256x8xf32>
    %7 = arith.mulf %5, %6 : vector<256x8xf32>
    %c0_3 = arith.constant 0 : index
    %c0_4 = arith.constant 0 : index
    %8 = vector.load %arg3[%c0_3, %c0_4] : memref<256x8xf32, #tpu.memory_space<vmem>>, vector<256x8xf32>
    tpu.vector_store %arg3[%c0_3, %c0_4], %7 {strides = array<i32>} : memref<256x8xf32, #tpu.memory_space<vmem>>, vector<256x8xf32>,
    return
  }
  func.func @transform_0(%arg0: i32) -> (i32, i32) {
    %c0_i32 = arith.constant 0 : i32
    %c0_i32_0 = arith.constant 0 : i32
    return %arg0, %c0_i32 : i32, i32
  }
  func.func @transform_1(%arg0: i32) -> (i32, i32) {
    %c0_i32 = arith.constant 0 : i32
    %c0_i32_0 = arith.constant 0 : i32
    return %arg0, %c0_i32 : i32, i32
  }
  func.func @transform_2(%arg0: i32) -> (i32, i32) {
    %c0_i32 = arith.constant 0 : i32
    %c0_i32_0 = arith.constant 0 : i32
    return %arg0, %c0_i32 : i32, i32
  }
}

</mosaic_0001>

<llo_original>
// kernel: tpu_custom_call.1
$region0: #{tpu_custom_call.1}
  #allocation0 [shape = 'u32[]', space=smem, size = 0x4, offset = 0x4, fixed_abs, tag = 'smem constant byte address 0x4 - core index']
  #allocation1 [shape = 'u32[144,128]{1,0:T(1,128)}', space=vmem, size = 0x12000, scoped, tag = 'internal scratch']
  %s0 = inlined_call_operand.vmem [shape: f32[256,8], index: 0, kind: input, shape index: {}]
  %s1 = inlined_call_operand.vmem [shape: f32[256,1], index: 1, kind: input, shape index: {}]
  %s2 = inlined_call_operand.vmem [shape: f32[256,8], index: 2, kind: output, shape index: {}]
  %s3 = sld [smem:[#allocation0]]
  $region18: #{tpu_custom_call.1} parent=0
    _
  %s5 = ssub.s32 1, %s3
  %s6 = scalar_select 0, %s5, %s3
  // Predicated region
  $region2: #{tpu_custom_call.1} parent=0 // pred_check
    _
  $region3: #{tpu_custom_call.1} parent=0 // pred_check_branch
    %8 = sbr.rel (0) target = $region5
  $region4: #{tpu_custom_call.1} parent=0 // pred_region
    _
  $region5: #{tpu_custom_call.1} parent=0 // pred_fallthru
    _
  // Predicated region
  $region6: #{tpu_custom_call.1} parent=0 // pred_check
    _
  $region7: #{tpu_custom_call.1} parent=0 // pred_check_branch
    %10 = sbr.rel (0) target = $region9
  $region8: #{tpu_custom_call.1} parent=0 // pred_region
    _
  $region9: #{tpu_custom_call.1} parent=0 // pred_fallthru
    _
  %v11 = vld [vmem:[%s1] sm:$0xff]
  %v12 = vld [vmem:[%s1 + $0x8] sm:$0xff]
  %v13 = vld [vmem:[%s1 + $0x10] sm:$0xff]
  %v14 = vld [vmem:[%s1 + $0x18] sm:$0xff]
  %v15 = vld [vmem:[%s1 + $0x20] sm:$0xff]
  %v16 = vld [vmem:[%s1 + $0x28] sm:$0xff]
  %v17 = vld [vmem:[%s1 + $0x30] sm:$0xff]
  %v18 = vld [vmem:[%s1 + $0x38] sm:$0xff]
  %v19 = vld [vmem:[%s1 + $0x40] sm:$0xff]
  %v20 = vld [vmem:[%s1 + $0x48] sm:$0xff]
  %v21 = vld [vmem:[%s1 + $0x50] sm:$0xff]
  %v22 = vld [vmem:[%s1 + $0x58] sm:$0xff]
  %v23 = vld [vmem:[%s1 + $0x60] sm:$0xff]
  %v24 = vld [vmem:[%s1 + $0x68] sm:$0xff]
  %v25 = vld [vmem:[%s1 + $0x70] sm:$0xff]
  %v26 = vld [vmem:[%s1 + $0x78] sm:$0xff]
  %v27 = vld [vmem:[%s1 + $0x80] sm:$0xff]
  %v28 = vld [vmem:[%s1 + $0x88] sm:$0xff]
  %v29 = vld [vmem:[%s1 + $0x90] sm:$0xff]
  %v30 = vld [vmem:[%s1 + $0x98] sm:$0xff]
  %v31 = vld [vmem:[%s1 + $0xa0] sm:$0xff]
  %v32 = vld [vmem:[%s1 + $0xa8] sm:$0xff]
  %v33 = vld [vmem:[%s1 + $0xb0] sm:$0xff]
  %v34 = vld [vmem:[%s1 + $0xb8] sm:$0xff]
  %v35 = vld [vmem:[%s1 + $0xc0] sm:$0xff]
  %v36 = vld [vmem:[%s1 + $0xc8] sm:$0xff]
  %v37 = vld [vmem:[%s1 + $0xd0] sm:$0xff]
  %v38 = vld [vmem:[%s1 + $0xd8] sm:$0xff]
  %v39 = vld [vmem:[%s1 + $0xe0] sm:$0xff]
  %v40 = vld [vmem:[%s1 + $0xe8] sm:$0xff]
  %v41 = vld [vmem:[%s1 + $0xf0] sm:$0xff]
  %v42 = vld [vmem:[%s1 + $0xf8] sm:$0xff]
  %vm43 = vcmp.gt.f32.partialorder %v11, 0.0
  %vm44 = vcmp.gt.f32.partialorder %v12, 0.0
  %vm45 = vcmp.gt.f32.partialorder %v13, 0.0
  %vm46 = vcmp.gt.f32.partialorder %v14, 0.0
  %vm47 = vcmp.gt.f32.partialorder %v15, 0.0
  %vm48 = vcmp.gt.f32.partialorder %v16, 0.0
  %vm49 = vcmp.gt.f32.partialorder %v17, 0.0
  %vm50 = vcmp.gt.f32.partialorder %v18, 0.0
  %vm51 = vcmp.gt.f32.partialorder %v19, 0.0
  %vm52 = vcmp.gt.f32.partialorder %v20, 0.0
  %vm53 = vcmp.gt.f32.partialorder %v21, 0.0
  %vm54 = vcmp.gt.f32.partialorder %v22, 0.0
  %vm55 = vcmp.gt.f32.partialorder %v23, 0.0
  %vm56 = vcmp.gt.f32.partialorder %v24, 0.0
  %vm57 = vcmp.gt.f32.partialorder %v25, 0.0
  %vm58 = vcmp.gt.f32.partialorder %v26, 0.0
  %vm59 = vcmp.gt.f32.partialorder %v27, 0.0
  %vm60 = vcmp.gt.f32.partialorder %v28, 0.0
  %vm61 = vcmp.gt.f32.partialorder %v29, 0.0
  %vm62 = vcmp.gt.f32.partialorder %v30, 0.0
  %vm63 = vcmp.gt.f32.partialorder %v31, 0.0
  %vm64 = vcmp.gt.f32.partialorder %v32, 0.0
  %vm65 = vcmp.gt.f32.partialorder %v33, 0.0
  %vm66 = vcmp.gt.f32.partialorder %v34, 0.0
  %vm67 = vcmp.gt.f32.partialorder %v35, 0.0
  %vm68 = vcmp.gt.f32.partialorder %v36, 0.0
  %vm69 = vcmp.gt.f32.partialorder %v37, 0.0
  %vm70 = vcmp.gt.f32.partialorder %v38, 0.0
  %vm71 = vcmp.gt.f32.partialorder %v39, 0.0
  %vm72 = vcmp.gt.f32.partialorder %v40, 0.0
  %vm73 = vcmp.gt.f32.partialorder %v41, 0.0
  %vm74 = vcmp.gt.f32.partialorder %v42, 0.0
  %v75 = vsel %vm43, 1, 0
  %v76 = vsel %vm44, 1, 0
  %v77 = vsel %vm45, 1, 0
  %v78 = vsel %vm46, 1, 0
  %v79 = vsel %vm47, 1, 0
  %v80 = vsel %vm48, 1, 0
  %v81 = vsel %vm49, 1, 0
  %v82 = vsel %vm50, 1, 0
  %v83 = vsel %vm51, 1, 0
  %v84 = vsel %vm52, 1, 0
  %v85 = vsel %vm53, 1, 0
  %v86 = vsel %vm54, 1, 0
  %v87 = vsel %vm55, 1, 0
  %v88 = vsel %vm56, 1, 0
  %v89 = vsel %vm57, 1, 0
  %v90 = vsel %vm58, 1, 0
  %v91 = vsel %vm59, 1, 0
  %v92 = vsel %vm60, 1, 0
  %v93 = vsel %vm61, 1, 0
  %v94 = vsel %vm62, 1, 0
  %v95 = vsel %vm63, 1, 0
  %v96 = vsel %vm64, 1, 0
  %v97 = vsel %vm65, 1, 0
  %v98 = vsel %vm66, 1, 0
  %v99 = vsel %vm67, 1, 0
  %v100 = vsel %vm68, 1, 0
  %v101 = vsel %vm69, 1, 0
  %v102 = vsel %vm70, 1, 0
  %v103 = vsel %vm71, 1, 0
  %v104 = vsel %vm72, 1, 0
  %v105 = vsel %vm73, 1, 0
  %v106 = vsel %vm74, 1, 0
  %v107 = vcvt.s32.f32 %v75
  %v108 = vcvt.s32.f32 %v76
  %v109 = vcvt.s32.f32 %v77
  %v110 = vcvt.s32.f32 %v78
  %v111 = vcvt.s32.f32 %v79
  %v112 = vcvt.s32.f32 %v80
  %v113 = vcvt.s32.f32 %v81
  %v114 = vcvt.s32.f32 %v82
  %v115 = vcvt.s32.f32 %v83
  %v116 = vcvt.s32.f32 %v84
  %v117 = vcvt.s32.f32 %v85
  %v118 = vcvt.s32.f32 %v86
  %v119 = vcvt.s32.f32 %v87
  %v120 = vcvt.s32.f32 %v88
  %v121 = vcvt.s32.f32 %v89
  %v122 = vcvt.s32.f32 %v90
  %v123 = vcvt.s32.f32 %v91
  %v124 = vcvt.s32.f32 %v92
  %v125 = vcvt.s32.f32 %v93
  %v126 = vcvt.s32.f32 %v94
  %v127 = vcvt.s32.f32 %v95
  %v128 = vcvt.s32.f32 %v96
  %v129 = vcvt.s32.f32 %v97
  %v130 = vcvt.s32.f32 %v98
  %v131 = vcvt.s32.f32 %v99
  %v132 = vcvt.s32.f32 %v100
  %v133 = vcvt.s32.f32 %v101
  %v134 = vcvt.s32.f32 %v102
  %v135 = vcvt.s32.f32 %v103
  %v136 = vcvt.s32.f32 %v104
  %v137 = vcvt.s32.f32 %v105
  %v138 = vcvt.s32.f32 %v106
  %v139 = vld [vmem:[%s0] sm:$0xff]
  %v140 = vld [vmem:[%s0 + $0x8] sm:$0xff]
  %v141 = vld [vmem:[%s0 + $0x10] sm:$0xff]
  %v142 = vld [vmem:[%s0 + $0x18] sm:$0xff]
  %v143 = vld [vmem:[%s0 + $0x20] sm:$0xff]
  %v144 = vld [vmem:[%s0 + $0x28] sm:$0xff]
  %v145 = vld [vmem:[%s0 + $0x30] sm:$0xff]
  %v146 = vld [vmem:[%s0 + $0x38] sm:$0xff]
  %v147 = vld [vmem:[%s0 + $0x40] sm:$0xff]
  %v148 = vld [vmem:[%s0 + $0x48] sm:$0xff]
  %v149 = vld [vmem:[%s0 + $0x50] sm:$0xff]
  %v150 = vld [vmem:[%s0 + $0x58] sm:$0xff]
  %v151 = vld [vmem:[%s0 + $0x60] sm:$0xff]
  %v152 = vld [vmem:[%s0 + $0x68] sm:$0xff]
  %v153 = vld [vmem:[%s0 + $0x70] sm:$0xff]
  %v154 = vld [vmem:[%s0 + $0x78] sm:$0xff]
  %v155 = vld [vmem:[%s0 + $0x80] sm:$0xff]
  %v156 = vld [vmem:[%s0 + $0x88] sm:$0xff]
  %v157 = vld [vmem:[%s0 + $0x90] sm:$0xff]
  %v158 = vld [vmem:[%s0 + $0x98] sm:$0xff]
  %v159 = vld [vmem:[%s0 + $0xa0] sm:$0xff]
  %v160 = vld [vmem:[%s0 + $0xa8] sm:$0xff]
  %v161 = vld [vmem:[%s0 + $0xb0] sm:$0xff]
  %v162 = vld [vmem:[%s0 + $0xb8] sm:$0xff]
  %v163 = vld [vmem:[%s0 + $0xc0] sm:$0xff]
  %v164 = vld [vmem:[%s0 + $0xc8] sm:$0xff]
  %v165 = vld [vmem:[%s0 + $0xd0] sm:$0xff]
  %v166 = vld [vmem:[%s0 + $0xd8] sm:$0xff]
  %v167 = vld [vmem:[%s0 + $0xe0] sm:$0xff]
  %v168 = vld [vmem:[%s0 + $0xe8] sm:$0xff]
  %v169 = vld [vmem:[%s0 + $0xf0] sm:$0xff]
  %v170 = vld [vmem:[%s0 + $0xf8] sm:$0xff]
  %172 = vset.pattern.permute.xlu0 0
  %173 = vperm.xlu0 %172, %v107
  %v174 = vpop.permute.xlu0 %173
  %177 = vset.pattern.permute.xlu0 0
  %178 = vperm.xlu0 %177, %v108
  %v179 = vpop.permute.xlu0 %178
  %182 = vset.pattern.permute.xlu0 0
  %183 = vperm.xlu0 %182, %v109
  %v184 = vpop.permute.xlu0 %183
  %187 = vset.pattern.permute.xlu0 0
  %188 = vperm.xlu0 %187, %v110
  %v189 = vpop.permute.xlu0 %188
  %192 = vset.pattern.permute.xlu0 0
  %193 = vperm.xlu0 %192, %v111
  %v194 = vpop.permute.xlu0 %193
  %197 = vset.pattern.permute.xlu0 0
  %198 = vperm.xlu0 %197, %v112
  %v199 = vpop.permute.xlu0 %198
  %202 = vset.pattern.permute.xlu0 0
  %203 = vperm.xlu0 %202, %v113
  %v204 = vpop.permute.xlu0 %203
  %207 = vset.pattern.permute.xlu0 0
  %208 = vperm.xlu0 %207, %v114
  %v209 = vpop.permute.xlu0 %208
  %212 = vset.pattern.permute.xlu0 0
  %213 = vperm.xlu0 %212, %v115
  %v214 = vpop.permute.xlu0 %213
  %217 = vset.pattern.permute.xlu0 0
  %218 = vperm.xlu0 %217, %v116
  %v219 = vpop.permute.xlu0 %218
  %222 = vset.pattern.permute.xlu0 0
  %223 = vperm.xlu0 %222, %v117
  %v224 = vpop.permute.xlu0 %223
  %227 = vset.pattern.permute.xlu0 0
  %228 = vperm.xlu0 %227, %v118
  %v229 = vpop.permute.xlu0 %228
  %232 = vset.pattern.permute.xlu0 0
  %233 = vperm.xlu0 %232, %v119
  %v234 = vpop.permute.xlu0 %233
  %237 = vset.pattern.permute.xlu0 0
  %238 = vperm.xlu0 %237, %v120
  %v239 = vpop.permute.xlu0 %238
  %242 = vset.pattern.permute.xlu0 0
  %243 = vperm.xlu0 %242, %v121
  %v244 = vpop.permute.xlu0 %243
  %247 = vset.pattern.permute.xlu0 0
  %248 = vperm.xlu0 %247, %v122
  %v249 = vpop.permute.xlu0 %248
  %252 = vset.pattern.permute.xlu0 0
  %253 = vperm.xlu0 %252, %v123
  %v254 = vpop.permute.xlu0 %253
  %257 = vset.pattern.permute.xlu0 0
  %258 = vperm.xlu0 %257, %v124
  %v259 = vpop.permute.xlu0 %258
  %262 = vset.pattern.permute.xlu0 0
  %263 = vperm.xlu0 %262, %v125
  %v264 = vpop.permute.xlu0 %263
  %267 = vset.pattern.permute.xlu0 0
  %268 = vperm.xlu0 %267, %v126
  %v269 = vpop.permute.xlu0 %268
  %272 = vset.pattern.permute.xlu0 0
  %273 = vperm.xlu0 %272, %v127
  %v274 = vpop.permute.xlu0 %273
  %277 = vset.pattern.permute.xlu0 0
  %278 = vperm.xlu0 %277, %v128
  %v279 = vpop.permute.xlu0 %278
  %282 = vset.pattern.permute.xlu0 0
  %283 = vperm.xlu0 %282, %v129
  %v284 = vpop.permute.xlu0 %283
  %287 = vset.pattern.permute.xlu0 0
  %288 = vperm.xlu0 %287, %v130
  %v289 = vpop.permute.xlu0 %288
  %292 = vset.pattern.permute.xlu0 0
  %293 = vperm.xlu0 %292, %v131
  %v294 = vpop.permute.xlu0 %293
  %297 = vset.pattern.permute.xlu0 0
  %298 = vperm.xlu0 %297, %v132
  %v299 = vpop.permute.xlu0 %298
  %302 = vset.pattern.permute.xlu0 0
  %303 = vperm.xlu0 %302, %v133
  %v304 = vpop.permute.xlu0 %303
  %307 = vset.pattern.permute.xlu0 0
  %308 = vperm.xlu0 %307, %v134
  %v309 = vpop.permute.xlu0 %308
  %312 = vset.pattern.permute.xlu0 0
  %313 = vperm.xlu0 %312, %v135
  %v314 = vpop.permute.xlu0 %313
  %317 = vset.pattern.permute.xlu0 0
  %318 = vperm.xlu0 %317, %v136
  %v319 = vpop.permute.xlu0 %318
  %322 = vset.pattern.permute.xlu0 0
  %323 = vperm.xlu0 %322, %v137
  %v324 = vpop.permute.xlu0 %323
  %327 = vset.pattern.permute.xlu0 0
  %328 = vperm.xlu0 %327, %v138
  %v329 = vpop.permute.xlu0 %328
  %v331 = vmul.f32 %v139, %v174
  %v332 = vmul.f32 %v140, %v179
  %v333 = vmul.f32 %v141, %v184
  %v334 = vmul.f32 %v142, %v189
  %v335 = vmul.f32 %v143, %v194
  %v336 = vmul.f32 %v144, %v199
  %v337 = vmul.f32 %v145, %v204
  %v338 = vmul.f32 %v146, %v209
  %v339 = vmul.f32 %v147, %v214
  %v340 = vmul.f32 %v148, %v219
  %v341 = vmul.f32 %v149, %v224
  %v342 = vmul.f32 %v150, %v229
  %v343 = vmul.f32 %v151, %v234
  %v344 = vmul.f32 %v152, %v239
  %v345 = vmul.f32 %v153, %v244
  %v346 = vmul.f32 %v154, %v249
  %v347 = vmul.f32 %v155, %v254
  %v348 = vmul.f32 %v156, %v259
  %v349 = vmul.f32 %v157, %v264
  %v350 = vmul.f32 %v158, %v269
  %v351 = vmul.f32 %v159, %v274
  %v352 = vmul.f32 %v160, %v279
  %v353 = vmul.f32 %v161, %v284
  %v354 = vmul.f32 %v162, %v289
  %v355 = vmul.f32 %v163, %v294
  %v356 = vmul.f32 %v164, %v299
  %v357 = vmul.f32 %v165, %v304
  %v358 = vmul.f32 %v166, %v309
  %v359 = vmul.f32 %v167, %v314
  %v360 = vmul.f32 %v168, %v319
  %v361 = vmul.f32 %v169, %v324
  %v362 = vmul.f32 %v170, %v329
  %vm363 = vcmask 64512
  %364 = vst.msk [vmem:[%s2] sm:$0xff] %vm363, %v331
  %365 = vst.msk [vmem:[%s2 + $0x8] sm:$0xff] %vm363, %v332
  %366 = vst.msk [vmem:[%s2 + $0x10] sm:$0xff] %vm363, %v333
  %367 = vst.msk [vmem:[%s2 + $0x18] sm:$0xff] %vm363, %v334
  %368 = vst.msk [vmem:[%s2 + $0x20] sm:$0xff] %vm363, %v335
  %369 = vst.msk [vmem:[%s2 + $0x28] sm:$0xff] %vm363, %v336
  %370 = vst.msk [vmem:[%s2 + $0x30] sm:$0xff] %vm363, %v337
  %371 = vst.msk [vmem:[%s2 + $0x38] sm:$0xff] %vm363, %v338
  %372 = vst.msk [vmem:[%s2 + $0x40] sm:$0xff] %vm363, %v339
  %373 = vst.msk [vmem:[%s2 + $0x48] sm:$0xff] %vm363, %v340
  %374 = vst.msk [vmem:[%s2 + $0x50] sm:$0xff] %vm363, %v341
  %375 = vst.msk [vmem:[%s2 + $0x58] sm:$0xff] %vm363, %v342
  %376 = vst.msk [vmem:[%s2 + $0x60] sm:$0xff] %vm363, %v343
  %377 = vst.msk [vmem:[%s2 + $0x68] sm:$0xff] %vm363, %v344
  %378 = vst.msk [vmem:[%s2 + $0x70] sm:$0xff] %vm363, %v345
  %379 = vst.msk [vmem:[%s2 + $0x78] sm:$0xff] %vm363, %v346
  %380 = vst.msk [vmem:[%s2 + $0x80] sm:$0xff] %vm363, %v347
  %381 = vst.msk [vmem:[%s2 + $0x88] sm:$0xff] %vm363, %v348
  %382 = vst.msk [vmem:[%s2 + $0x90] sm:$0xff] %vm363, %v349
  %383 = vst.msk [vmem:[%s2 + $0x98] sm:$0xff] %vm363, %v350
  %384 = vst.msk [vmem:[%s2 + $0xa0] sm:$0xff] %vm363, %v351
  %385 = vst.msk [vmem:[%s2 + $0xa8] sm:$0xff] %vm363, %v352
  %386 = vst.msk [vmem:[%s2 + $0xb0] sm:$0xff] %vm363, %v353
  %387 = vst.msk [vmem:[%s2 + $0xb8] sm:$0xff] %vm363, %v354
  %388 = vst.msk [vmem:[%s2 + $0xc0] sm:$0xff] %vm363, %v355
  %389 = vst.msk [vmem:[%s2 + $0xc8] sm:$0xff] %vm363, %v356
  %390 = vst.msk [vmem:[%s2 + $0xd0] sm:$0xff] %vm363, %v357
  %391 = vst.msk [vmem:[%s2 + $0xd8] sm:$0xff] %vm363, %v358
  %392 = vst.msk [vmem:[%s2 + $0xe0] sm:$0xff] %vm363, %v359
  %393 = vst.msk [vmem:[%s2 + $0xe8] sm:$0xff] %vm363, %v360
  %394 = vst.msk [vmem:[%s2 + $0xf0] sm:$0xff] %vm363, %v361
  %395 = vst.msk [vmem:[%s2 + $0xf8] sm:$0xff] %vm363, %v362
  // Predicated region
  $region10: #{tpu_custom_call.1} parent=0 // pred_check
    _
  $region11: #{tpu_custom_call.1} parent=0 // pred_check_branch
    %397 = sbr.rel (0) target = $region13
  $region12: #{tpu_custom_call.1} parent=0 // pred_region
    _
  $region13: #{tpu_custom_call.1} parent=0 // pred_fallthru
    _
  // Predicated region
  $region14: #{tpu_custom_call.1} parent=0 // pred_check
    _
  $region15: #{tpu_custom_call.1} parent=0 // pred_check_branch
    %399 = sbr.rel (0) target = $region17
  $region16: #{tpu_custom_call.1} parent=0 // pred_region
    _
  $region17: #{tpu_custom_call.1} parent=0 // pred_fallthru
    _

</llo_original>
